<compile_context>
chip_gen: v6e
topology: v6e:2x2x1
jax: 0.10.0
libtpu: 0.0.40
codegen_flags: <defaults>
</compile_context>

<pallas_src>
import jax
import jax.numpy as jnp
from jax.experimental import pallas as pl
from jax.experimental.pallas import tpu as pltpu


def _round_up(a: int, b: int) -> int:
    return (a + b - 1) // b * b


def _stats_kernel(x_ref, w_ref, zsum_ref, zsq_ref):
    """Pass 1: accumulate per-channel sum and sum-of-squares of z = x @ W."""
    @pl.when(pl.program_id(0) == 0)
    def _init():
        zsum_ref[...] = jnp.zeros_like(zsum_ref)
        zsq_ref[...] = jnp.zeros_like(zsq_ref)

    z = jnp.dot(x_ref[...].astype(jnp.float32), w_ref[...].astype(jnp.float32),
                preferred_element_type=jnp.float32)            # [tile, Fout_pad]
    zsum_ref[...] += jnp.sum(z, axis=0, keepdims=True)
    zsq_ref[...] += jnp.sum(z * z, axis=0, keepdims=True)


def _normalize_kernel(x_ref, w_ref, mean_ref, inv_std_ref, o_ref):
    """Pass 2: z = x @ W, batch-norm (precomputed stats), ReLU, store."""
    z = jnp.dot(x_ref[...].astype(jnp.float32), w_ref[...].astype(jnp.float32),
                preferred_element_type=jnp.float32)            # [tile, Fout_pad]
    y = (z - mean_ref[...]) * inv_std_ref[...]
    o_ref[...] = jnp.maximum(y, 0.0).astype(o_ref.dtype)


def shared_mlp2d(x, weight, bias=None, *, tile_n=1024,
                 compute_dtype=jnp.float32):
    """x: [B, 1, P, F_in] (NCHW); weight: [F_in, F_out]; bias unused (cancelled
    by BatchNorm(affine=False, eps=0)).  Returns [B, 1, P, F_out] f32, matching
    the PyTorch SharedMLP2D forward (conv + BN + permute(0,3,2,1) + ReLU)."""
    del bias  # mathematically cancelled by the batch-mean subtraction
    B, C, P, Fin = x.shape
    assert C == 1, "channel dim must be 1"
    Fout = weight.shape[1]
    N = B * P

    # Lane-dense output channels; padded row count divisible by the row tile.
    fout_pad = _round_up(Fout, 128)
    tn = _round_up(min(tile_n, _round_up(N, 8)), 8)
    n_pad = _round_up(N, tn)
    grid = (n_pad // tn,)
    itemsize = jnp.dtype(compute_dtype).itemsize

    x2d = x.reshape(N, Fin).astype(compute_dtype)
    if n_pad != N:
        x2d = jnp.pad(x2d, ((0, n_pad - N), (0, 0)))           # zero rows: no
        # contribution to sum / sumsq; sliced off after pass 2.
    w = weight.astype(compute_dtype)
    if fout_pad != Fout:
        w = jnp.pad(w, ((0, 0), (0, fout_pad - Fout)))          # zero channels

    # ---- Pass 1: batch statistics (sequential accumulation over row tiles) --
    stats_cost = pl.CostEstimate(
        flops=2 * n_pad * Fin * fout_pad + 3 * n_pad * fout_pad,
        transcendentals=0,
        bytes_accessed=itemsize * (n_pad * Fin + Fin * fout_pad) + 8 * fout_pad)
    zsum, zsq = pl.pallas_call(
        _stats_kernel,
        out_shape=(jax.ShapeDtypeStruct((1, fout_pad), jnp.float32),
                   jax.ShapeDtypeStruct((1, fout_pad), jnp.float32)),
        grid=grid,
        in_specs=[
            pl.BlockSpec((tn, Fin), lambda i: (i, 0)),
            pl.BlockSpec((Fin, fout_pad), lambda i: (0, 0)),
        ],
        out_specs=(
            pl.BlockSpec((1, fout_pad), lambda i: (0, 0)),
            pl.BlockSpec((1, fout_pad), lambda i: (0, 0)),
        ),
        compiler_params=pltpu.CompilerParams(
            dimension_semantics=("arbitrary",)),
        cost_estimate=stats_cost,
    )(x2d, w)

    # Tiny [1, fout_pad] finalize in plain JAX (negligible).
    n_f = jnp.float32(N)
    mean = zsum / n_f
    var = jnp.maximum(zsq / n_f - mean * mean, 0.0)   # biased var, eps=0
    inv_std = jax.lax.rsqrt(var)                      # Inf if a real channel has
    # exactly zero batch variance -- same behaviour as PyTorch BatchNorm2d(eps=0).
    # Padded channels (all-zero weight columns) would be 0*Inf = NaN; zero their
    # inv_std so no NaNs are ever materialized (they are sliced off anyway).
    col = jnp.arange(fout_pad, dtype=jnp.int32)[None, :]
    inv_std = jnp.where(col < Fout, inv_std, 0.0)

    # ---- Pass 2: normalize + ReLU (independent row tiles -> megacore) --------
    norm_cost = pl.CostEstimate(
        flops=2 * n_pad * Fin * fout_pad + 3 * n_pad * fout_pad,
        transcendentals=0,
        bytes_accessed=(itemsize * (n_pad * Fin + Fin * fout_pad)
                        + 8 * fout_pad + 4 * n_pad * fout_pad))
    out_pad = pl.pallas_call(
        _normalize_kernel,
        out_shape=jax.ShapeDtypeStruct((n_pad, fout_pad), jnp.float32),
        grid=grid,
        in_specs=[
            pl.BlockSpec((tn, Fin), lambda i: (i, 0)),
            pl.BlockSpec((Fin, fout_pad), lambda i: (0, 0)),
            pl.BlockSpec((1, fout_pad), lambda i: (0, 0)),
            pl.BlockSpec((1, fout_pad), lambda i: (0, 0)),
        ],
        out_specs=pl.BlockSpec((tn, fout_pad), lambda i: (i, 0)),
        compiler_params=pltpu.CompilerParams(
            dimension_semantics=("parallel",)),
        cost_estimate=norm_cost,
    )(x2d, w, mean, inv_std)

    out2d = out_pad[:N, :Fout]
    return out2d.reshape(B, 1, P, Fout)


def _reference(x, weight, bias):
    # Pure-JAX reference of the PyTorch forward pass (bias included to show
    # it is cancelled by the batch-norm mean subtraction).
    z = jnp.einsum("bcpf,fo->bop", x[:, 0:1].astype(jnp.float32),
                   weight.astype(jnp.float32))          # [B, F_out, P]
    z = z + bias[None, :, None]
    z = z[:, :, :, None]                                # [B, F_out, P, 1]
    mean = jnp.mean(z, axis=(0, 2, 3), keepdims=True)
    var = jnp.mean((z - mean) ** 2, axis=(0, 2, 3), keepdims=True)
    z = (z - mean) / jnp.sqrt(var)
    z = jnp.transpose(z, (0, 3, 2, 1))                  # permute(0,3,2,1)
    return jnp.maximum(z, 0.0)


if __name__ == "__main__":
    B, P, Fin, Fout = 2, 16, 4, 32

    key = jax.random.PRNGKey(0)
    kx, kw, kb = jax.random.split(key, 3)

    x = jax.random.normal(kx, (B, 1, P, Fin), dtype=jnp.float32)
    # Conv weight [F_out, 1, 1, F_in] pre-transposed to [F_in, F_out].
    weight = jax.random.normal(kw, (Fin, Fout), dtype=jnp.float32) * 0.5
    bias = jax.random.normal(kb, (Fout,), dtype=jnp.float32) * 0.1

    out = shared_mlp2d(x, weight, bias)
    out = jax.block_until_ready(out)

    ref = _reference(x, weight, bias)
    assert out.shape == (B, 1, P, Fout)
    assert jnp.allclose(out, ref, atol=1e-4, rtol=1e-4)

    print("KERNEL_OK")
</pallas_src>

<mosaic_0001>
module attributes {stable_mosaic.version = 11 : i64} {
  func.func @_stats_kernel(%arg0: i32, %arg1: memref<32x4xf32, #tpu.memory_space<vmem>>, %arg2: memref<4x128xf32, #tpu.memory_space<vmem>>, %arg3: memref<1x128xf32, #tpu.memory_space<vmem>>, %arg4: memref<1x128xf32, #tpu.memory_space<vmem>>) attributes {dimension_semantics = [#tpu.dimension_semantics<arbitrary>], iteration_bounds = array<i64: 1>, scalar_prefetch = 0 : i64, scratch_operands = 0 : i64, tpu.core_type = #tpu.core_type<tc>, window_params = [{transform_indices = @transform_0, window_bounds = array<i64: 32, 4>}, {pipeline_mode = #tpu.pipeline_mode<synchronous>, transform_indices = @transform_1, window_bounds = array<i64: 4, 128>}, {pipeline_mode = #tpu.pipeline_mode<synchronous>, transform_indices = @transform_2, window_bounds = array<i64: 1, 128>}, {pipeline_mode = #tpu.pipeline_mode<synchronous>, transform_indices = @transform_3, window_bounds = array<i64: 1, 128>}]} {
    %c0_i32 = arith.constant 0 : i32
    %0 = arith.cmpi eq, %arg0, %c0_i32 : i32
    %1 = arith.extui %0 : i1 to i32
    %c0_i32_0 = arith.constant 0 : i32
    %2 = arith.cmpi ne, %1, %c0_i32_0 : i32
    scf.if %2 {
      %cst_14 = arith.constant 0.000000e+00 : f32
      %17 = vector.broadcast %cst_14 : f32 to vector<1x128xf32>
      %c0_15 = arith.constant 0 : index
      %c0_16 = arith.constant 0 : index
      %18 = vector.load %arg3[%c0_15, %c0_16] : memref<1x128xf32, #tpu.memory_space<vmem>>, vector<1x128xf32>
      tpu.vector_store %arg3[%c0_15, %c0_16], %17 {strides = array<i32>} : memref<1x128xf32, #tpu.memory_space<vmem>>, vector<1x128xf32>,
      %cst_17 = arith.constant 0.000000e+00 : f32
      %19 = vector.broadcast %cst_17 : f32 to vector<1x128xf32>
      %c0_18 = arith.constant 0 : index
      %c0_19 = arith.constant 0 : index
      %20 = vector.load %arg4[%c0_18, %c0_19] : memref<1x128xf32, #tpu.memory_space<vmem>>, vector<1x128xf32>
      tpu.vector_store %arg4[%c0_18, %c0_19], %19 {strides = array<i32>} : memref<1x128xf32, #tpu.memory_space<vmem>>, vector<1x128xf32>,
    } else {
    }
    %c0 = arith.constant 0 : index
    %c0_1 = arith.constant 0 : index
    %3 = vector.load %arg1[%c0, %c0_1] : memref<32x4xf32, #tpu.memory_space<vmem>>, vector<32x4xf32>
    %c0_2 = arith.constant 0 : index
    %c0_3 = arith.constant 0 : index
    %4 = vector.load %arg2[%c0_2, %c0_3] : memref<4x128xf32, #tpu.memory_space<vmem>>, vector<4x128xf32>
    %cst = arith.constant dense<0.000000e+00> : vector<32x128xf32>
    %5 = tpu.matmul %3, %4, %cst {dimension_numbers = #tpu.dot_dimension_numbers<[1], [0], [0], [1], [0, 0, 1, 1], [], []>} : vector<32x4xf32>, vector<4x128xf32>, vector<32x128xf32> -> vector<32x128xf32>
    %c0_4 = arith.constant 0 : index
    %c0_5 = arith.constant 0 : index
    %6 = vector.load %arg3[%c0_4, %c0_5] : memref<1x128xf32, #tpu.memory_space<vmem>>, vector<1x128xf32>
    %cst_6 = arith.constant dense<0.000000e+00> : vector<128xf32>
    %7 = vector.multi_reduction <add>, %5, %cst_6 [0] : vector<32x128xf32> to vector<128xf32>
    %8 = vector.shape_cast %7 : vector<128xf32> to vector<1x128xf32>
    %9 = arith.addf %6, %8 : vector<1x128xf32>
    %c0_7 = arith.constant 0 : index
    %c0_8 = arith.constant 0 : index
    %10 = vector.load %arg3[%c0_7, %c0_8] : memref<1x128xf32, #tpu.memory_space<vmem>>, vector<1x128xf32>
    tpu.vector_store %arg3[%c0_7, %c0_8], %9 {strides = array<i32>} : memref<1x128xf32, #tpu.memory_space<vmem>>, vector<1x128xf32>,
    %c0_9 = arith.constant 0 : index
    %c0_10 = arith.constant 0 : index
    %11 = vector.load %arg4[%c0_9, %c0_10] : memref<1x128xf32, #tpu.memory_space<vmem>>, vector<1x128xf32>
    %12 = arith.mulf %5, %5 : vector<32x128xf32>
    %cst_11 = arith.constant dense<0.000000e+00> : vector<128xf32>
    %13 = vector.multi_reduction <add>, %12, %cst_11 [0] : vector<32x128xf32> to vector<128xf32>
    %14 = vector.shape_cast %13 : vector<128xf32> to vector<1x128xf32>
    %15 = arith.addf %11, %14 : vector<1x128xf32>
    %c0_12 = arith.constant 0 : index
    %c0_13 = arith.constant 0 : index
    %16 = vector.load %arg4[%c0_12, %c0_13] : memref<1x128xf32, #tpu.memory_space<vmem>>, vector<1x128xf32>
    tpu.vector_store %arg4[%c0_12, %c0_13], %15 {strides = array<i32>} : memref<1x128xf32, #tpu.memory_space<vmem>>, vector<1x128xf32>,
    return
  }
  func.func @transform_0(%arg0: i32) -> (i32, i32) {
    %c0_i32 = arith.constant 0 : i32
    %c0_i32_0 = arith.constant 0 : i32
    return %arg0, %c0_i32 : i32, i32
  }
  func.func @transform_1(%arg0: i32) -> (i32, i32) {
    %c0_i32 = arith.constant 0 : i32
    %c0_i32_0 = arith.constant 0 : i32
    %c0_i32_1 = arith.constant 0 : i32
    return %c0_i32, %c0_i32_0 : i32, i32
  }
  func.func @transform_2(%arg0: i32) -> (i32, i32) {
    %c0_i32 = arith.constant 0 : i32
    %c0_i32_0 = arith.constant 0 : i32
    %c0_i32_1 = arith.constant 0 : i32
    return %c0_i32, %c0_i32_0 : i32, i32
  }
  func.func @transform_3(%arg0: i32) -> (i32, i32) {
    %c0_i32 = arith.constant 0 : i32
    %c0_i32_0 = arith.constant 0 : i32
    %c0_i32_1 = arith.constant 0 : i32
    return %c0_i32, %c0_i32_0 : i32, i32
  }
}

</mosaic_0001>

<llo_original>
// kernel: tpu_custom_call.1
$region0: #{tpu_custom_call.1}
  #allocation0 [shape = 'u32[]', space=smem, size = 0x4, offset = 0x4, fixed_abs, tag = 'smem constant byte address 0x4 - core index']
  #allocation1 [shape = 'u32[144,128]{1,0:T(1,128)}', space=vmem, size = 0x12000, scoped, tag = 'internal scratch']
  %s0 = inlined_call_operand.vmem [shape: f32[32,4], index: 0, kind: input, shape index: {}]
  %s1 = inlined_call_operand.vmem [shape: f32[4,128], index: 1, kind: input, shape index: {}]
  %s2 = inlined_call_operand.hbm [shape: f32[1,128], index: 2, kind: output, shape index: {0}]
  %s3 = inlined_call_operand.hbm [shape: f32[1,128], index: 3, kind: output, shape index: {1}]
  %4 = xla_tuple %s2, %s3
  %s5 = sld [smem:[#allocation0]]
  $region30: #{tpu_custom_call.1} parent=0
    _
  %s7 = ssub.s32 1, %s5
  %s8 = scalar_select 0, %s7, %s5
  $region1: #{tpu_custom_call.1} parent=0
    #allocation2 [shape = 'u8[512]{0}', space=vmem, size = 0x400, scoped, tag = 'output window, operand 0, single buffered']
    #allocation3 [shape = 's32[1]{0}', space=sflag, size = 0x4, scoped, tag = 'scoped memory for tpu_custom_call.1']
    #allocation4 [shape = 'u8[512]{0}', space=vmem, size = 0x400, scoped, tag = 'output window, operand 1, single buffered']
    #allocation5 [shape = 's32[1]{0}', space=sflag, size = 0x4, scoped, tag = 'scoped memory for tpu_custom_call.1']
    %9 = vsyncpa [#allocation3], 0
    %10 = vsyncpa [#allocation5], 0
    // Predicated region
    $region2: #{tpu_custom_call.1} parent=1 // pred_check
      _
    $region3: #{tpu_custom_call.1} parent=1 // pred_check_branch
      %12 = sbr.rel (0) target = $region5
    $region4: #{tpu_custom_call.1} parent=1 // pred_region
      _
    $region5: #{tpu_custom_call.1} parent=1 // pred_fallthru
      _
    // Predicated region
    $region6: #{tpu_custom_call.1} parent=1 // pred_check
      _
    $region7: #{tpu_custom_call.1} parent=1 // pred_check_branch
      %14 = sbr.rel (0) target = $region9
    $region8: #{tpu_custom_call.1} parent=1 // pred_region
      _
    $region9: #{tpu_custom_call.1} parent=1 // pred_fallthru
      _
    %p15 = scmp.eq.s32.totalorder 0, 0
    // Predicated region
    $region10: #{tpu_custom_call.1} parent=1 // pred_check
      %p16 = pneg %p15
    $region11: #{tpu_custom_call.1} parent=1 // pred_check_branch
      %18 = sbr.rel (%p16) target = $region13
    $region12: #{tpu_custom_call.1} parent=1 // pred_region
      %19 = vst [vmem:[#allocation2] sm:$0x1] 0.0
      %20 = vst [vmem:[#allocation4] sm:$0x1] 0.0
    $region13: #{tpu_custom_call.1} parent=1 // pred_fallthru
      _
    %v21 = vld [vmem:[%s0] sm:$0xff]
    %v22 = vld [vmem:[%s0 + $0x8] sm:$0xff]
    %v23 = vld [vmem:[%s0 + $0x10] sm:$0xff]
    %v24 = vld [vmem:[%s0 + $0x18] sm:$0xff]
    %v25 = vld [vmem:[%s1] sm:$0xf]
    %vm26 = vcmask 31744
    %v28 = vsel %vm26, %v21, 0
    %v31 = vsel %vm26, %v22, 0
    %v34 = vsel %vm26, %v23, 0
    %v37 = vsel %vm26, %v24, 0
    %vm39 = vcmask 1043456
    %v41 = vsel %vm39, %v25, 0
    %43 = vmatprep.subr.mxu0 0.0
    %44 = vmatpush1.msra.mxu0 0.0
    %45 = vmatprep.subr.mxu0 0.0
    %46 = vmatpush1.msra.mxu0 0.0
    %47 = vmatprep.subr.mxu0 0.0
    %48 = vmatpush1.msra.mxu0 0.0
    %49 = vmatprep.subr.mxu0 0.0
    %50 = vmatpush1.msra.mxu0 0.0
    %51 = vmatprep.subr.mxu0 0.0
    %52 = vmatpush1.msra.mxu0 0.0
    %53 = vmatprep.subr.mxu0 0.0
    %54 = vmatpush1.msra.mxu0 0.0
    %55 = vmatprep.subr.mxu0 0.0
    %56 = vmatpush1.msra.mxu0 0.0
    %57 = vmatprep.subr.mxu0 0.0
    %58 = vmatpush1.msra.mxu0 0.0
    %59 = vmatprep.subr.mxu0 0.0
    %60 = vmatpush1.msra.mxu0 0.0
    %61 = vmatprep.subr.mxu0 0.0
    %62 = vmatpush1.msra.mxu0 0.0
    %63 = vmatprep.subr.mxu0 0.0
    %64 = vmatpush1.msra.mxu0 0.0
    %65 = vmatprep.subr.mxu0 0.0
    %66 = vmatpush1.msra.mxu0 0.0
    %67 = vmatprep.subr.mxu0 0.0
    %68 = vmatpush1.msra.mxu0 0.0
    %69 = vmatprep.subr.mxu0 0.0
    %70 = vmatpush1.msra.mxu0 0.0
    %71 = vmatprep.subr.mxu0 0.0
    %72 = vmatpush1.msra.mxu0 0.0
    %73 = vmatprep.subr.mxu0 0.0
    %74 = vmatpush1.msra.mxu0 %v41
    %75 = vmatprep.subr.mxu0 0.0
    %76 = vmatpush2.msra.mxu0 0.0
    %77 = vmatprep.subr.mxu0 0.0
    %78 = vmatpush2.msra.mxu0 0.0
    %79 = vmatprep.subr.mxu0 0.0
    %80 = vmatpush2.msra.mxu0 0.0
    %81 = vmatprep.subr.mxu0 0.0
    %82 = vmatpush2.msra.mxu0 0.0
    %83 = vmatprep.subr.mxu0 0.0
    %84 = vmatpush2.msra.mxu0 0.0
    %85 = vmatprep.subr.mxu0 0.0
    %86 = vmatpush2.msra.mxu0 0.0
    %87 = vmatprep.subr.mxu0 0.0
    %88 = vmatpush2.msra.mxu0 0.0
    %89 = vmatprep.subr.mxu0 0.0
    %90 = vmatpush2.msra.mxu0 0.0
    %91 = vmatprep.subr.mxu0 0.0
    %92 = vmatpush2.msra.mxu0 0.0
    %93 = vmatprep.subr.mxu0 0.0
    %94 = vmatpush2.msra.mxu0 0.0
    %95 = vmatprep.subr.mxu0 0.0
    %96 = vmatpush2.msra.mxu0 0.0
    %97 = vmatprep.subr.mxu0 0.0
    %98 = vmatpush2.msra.mxu0 0.0
    %99 = vmatprep.subr.mxu0 0.0
    %100 = vmatpush2.msra.mxu0 0.0
    %101 = vmatprep.subr.mxu0 0.0
    %102 = vmatpush2.msra.mxu0 0.0
    %103 = vmatprep.subr.mxu0 0.0
    %104 = vmatpush2.msra.mxu0 0.0
    %105 = vmatprep.subr.mxu0 0.0
    %106 = vmatpush2.msra.mxu0 0.0
    %107 = vmatprep.mubr.f32.mxu0 0.0
    %108 = vmatmul.mubr.f32.gmra.mxu0 %v28
    %v109 = vpop.f32.mrf.mxu0
    %v110 = vadd.f32 0.0, %v109
    %v111 = vpop.f32.mrf.mxu0
    %112 = vmatprep.mubr.f32.mxu0 0.0
    %113 = vmatmul.mubr.f32.gmra.mxu0 %v31
    %v114 = vpop.f32.mrf.mxu0
    %v115 = vadd.f32 0.0, %v114
    %v116 = vpop.f32.mrf.mxu0
    %117 = vmatprep.mubr.f32.mxu0 0.0
    %118 = vmatmul.mubr.f32.gmra.mxu0 %v34
    %v119 = vpop.f32.mrf.mxu0
    %v120 = vadd.f32 0.0, %v119
    %v121 = vpop.f32.mrf.mxu0
    %122 = vmatprep.mubr.f32.mxu0 0.0
    %123 = vmatmul.mubr.f32.gmra.mxu0 %v37
    %v124 = vpop.f32.mrf.mxu0
    %v125 = vadd.f32 0.0, %v124
    %v126 = vpop.f32.mrf.mxu0
    %127 = vdwg.mxu0
    %v128 = vld [vmem:[#allocation2] sm:$0x1]
    %v129 = vadd.f32 %v110, %v115
    %v130 = vadd.f32 %v129, %v120
    %v131 = vadd.f32 %v130, %v125
    %v132 = vrot.slane %v131, 4
    %v133 = vadd.f32 %v131, %v132
    %v134 = vrot.slane %v133, 2
    %v135 = vadd.f32 %v133, %v134
    %v136 = vrot.slane %v135, 1
    %v137 = vadd.f32 %v135, %v136
    %v138 = vadd.f32 %v128, %v137
    %139 = vst [vmem:[#allocation2] sm:$0x1] %v138
    %v140 = vld [vmem:[#allocation4] sm:$0x1]
    %v141 = vmul.f32 %v110, %v110
    %v142 = vmul.f32 %v115, %v115
    %v143 = vmul.f32 %v120, %v120
    %v144 = vmul.f32 %v125, %v125
    %v145 = vadd.f32 %v141, %v142
    %v146 = vadd.f32 %v145, %v143
    %v147 = vadd.f32 %v146, %v144
    %v148 = vrot.slane %v147, 4
    %v149 = vadd.f32 %v147, %v148
    %v150 = vrot.slane %v149, 2
    %v151 = vadd.f32 %v149, %v150
    %v152 = vrot.slane %v151, 1
    %v153 = vadd.f32 %v151, %v152
    %v154 = vadd.f32 %v140, %v153
    %155 = vst [vmem:[#allocation4] sm:$0x1] %v154
    // Predicated region
    $region14: #{tpu_custom_call.1} parent=1 // pred_check
      _
    $region15: #{tpu_custom_call.1} parent=1 // pred_check_branch
      %157 = sbr.rel (0) target = $region17
    $region16: #{tpu_custom_call.1} parent=1 // pred_region
      %s159 = ssub.s32 16, 16
      %160 = vsyncadd [#allocation3], %s159
      %s162 = sshll.u32 [#allocation2], 4
      %s163 = int_to_ptr.vmem [resolvable:$true] %s162
      %165 = dma.vmem_to_hbm [thread:$0]  %s163, 16, %s2, [#allocation3]
    $region17: #{tpu_custom_call.1} parent=1 // pred_fallthru
      _
    // Predicated region
    $region18: #{tpu_custom_call.1} parent=1 // pred_check
      _
    $region19: #{tpu_custom_call.1} parent=1 // pred_check_branch
      %167 = sbr.rel (0) target = $region21
    $region20: #{tpu_custom_call.1} parent=1 // pred_region
      %s169 = ssub.s32 16, 16
      %170 = vsyncadd [#allocation5], %s169
      %s172 = sshll.u32 [#allocation4], 4
      %s173 = int_to_ptr.vmem [resolvable:$true] %s172
      %175 = dma.vmem_to_hbm [thread:$0]  %s173, 16, %s3, [#allocation5]
    $region21: #{tpu_custom_call.1} parent=1 // pred_fallthru
      _
    // Predicated region
    $region22: #{tpu_custom_call.1} parent=1 // pred_check
      _
    $region23: #{tpu_custom_call.1} parent=1 // pred_check_branch
      %177 = sbr.rel (0) target = $region25
    $region24: #{tpu_custom_call.1} parent=1 // pred_region
      %178 = dma.done [#allocation3], 16
    $region25: #{tpu_custom_call.1} parent=1 // pred_fallthru
      _
    // Predicated region
    $region26: #{tpu_custom_call.1} parent=1 // pred_check
      _
    $region27: #{tpu_custom_call.1} parent=1 // pred_check_branch
      %180 = sbr.rel (0) target = $region29
    $region28: #{tpu_custom_call.1} parent=1 // pred_region
      %181 = dma.done [#allocation5], 16
    $region29: #{tpu_custom_call.1} parent=1 // pred_fallthru
      _
    %182 = vsyncpa [#allocation3], 1
    %183 = vsyncpa [#allocation5], 1

</llo_original>
